<compile_context>
chip_gen: v7x
topology: tpu7x:2x2x1
jax: 0.10.0
libtpu: 0.0.40
codegen_flags: <defaults>
</compile_context>

<pallas_src>
import jax
import jax.numpy as jnp
from jax.experimental import pallas as pl
from jax.experimental.pallas import tpu as pltpu


# ---------------------------------------------------------------------------
# VMEM planning (generation aware)
# ---------------------------------------------------------------------------
def _vmem_plan(n_streams):
    """Per-stream, per-buffer tile budget (bytes) and physical VMEM capacity."""
    try:
        cap = int(pltpu.get_tpu_info().vmem_capacity_bytes)
    except Exception:
        cap = 64 << 20  # conservative fallback: v7x has 64 MiB per TensorCore
    # Keep the whole double-buffered working set (2 buffers per hidden stream
    # + mask + output + scratch) within ~60% of physical VMEM, capped at 6 MiB
    # per buffer (diminishing per-step-overhead returns past that on all gens).
    budget = (cap * 6 // 10) // (2 * n_streams + 1)
    return max(1 << 20, min(6 << 20, budget)), cap


def _largest_div(total, quantum, max_size):
    """Largest divisor of `total` that is a multiple of `quantum` and <=
    max_size (assumes total % quantum == 0); falls back to `quantum`."""
    best = quantum
    for t in range(quantum, total + 1, quantum):
        if total % t == 0 and t <= max_size:
            best = t
    return best


def _pick_hidden_tile(H, itemsize, t_b, budget, want_split):
    """Lane-dimension tile: a multiple of 128 (or full H).  Split H only to
    (a) give v7x's second TensorCore a parallel tile when the batch axis has a
    single tile, or (b) let a minimal 128-row sequence slab fit the budget."""
    if H % 128 != 0:
        return H
    divs = [t for t in range(128, H + 1, 128) if H % t == 0]  # ascending
    best = divs[0]
    for t in divs:
        if want_split and t == H and len(divs) > 1:
            continue  # keep >= 2 hidden tiles
        if t_b * 128 * t * itemsize <= budget:
            best = t
    return best


def _pick_seq_tile(S, itemsize, t_b, t_h, budget):
    """Sequence tile and (possibly padded) sequence length.

    The mask's last block dim must be a multiple of 128 or the full (padded)
    S; S is padded only when a full-S block would not fit the VMEM budget."""
    row = t_b * t_h * itemsize  # bytes per sequence position per stream
    if S % 128 == 0:
        return S, _largest_div(S, 128, max(128, budget // row))
    if S * row <= budget:
        return S, S
    pad_s = -(-S // 128) * 128
    return pad_s, _largest_div(pad_s, 128, max(128, budget // row))


# ---------------------------------------------------------------------------
# Kernel
# ---------------------------------------------------------------------------
def _make_masked_avg_kernel(n_streams):
    denom_scale = float(n_streams)  # (h_1 + ... + h_n)/n folded into the divide

    def kernel(mask_ref, *rest):
        h_refs = rest[:n_streams]
        out_ref = rest[n_streams]
        num_acc, den_acc = rest[n_streams + 1:]
        s = pl.program_id(2)
        t_b = mask_ref.shape[0]

        @pl.when(s == 0)
        def _init():
            num_acc[...] = jnp.zeros_like(num_acc)
            den_acc[...] = jnp.zeros_like(den_acc)

        mask = mask_ref[...]                                   # [tB, tS] f32
        den_acc[...] += jnp.sum(mask, axis=1, keepdims=True)   # [tB, 1]

        # Masked sum over this sequence tile on the MXU: one [1,tS] x [tS,tH]
        # contraction per batch row per stream, f32 accumulation, hidden
        # states kept in their native dtype (no full-tile f32 upcast or VPU
        # multiply/sublane-reduce).  t_b <= 8, so the loop is a small static
        # unroll.
        for b in range(t_b):
            contrib = None
            for h_ref in h_refs:
                m_row = mask[b:b + 1, :].astype(h_ref.dtype)   # [1, tS]
                d = jax.lax.dot_general(
                    m_row, h_ref[b],                           # [1,tS]x[tS,tH]
                    dimension_numbers=(((1,), (0,)), ((), ())),
                    preferred_element_type=jnp.float32)
                contrib = d if contrib is None else contrib + d
            num_acc[pl.ds(b, 1), :] += contrib                 # [1, tH]

        @pl.when(s == pl.num_programs(2) - 1)
        def _finalize():
            out_ref[...] = (num_acc[...] /
                            (denom_scale * den_acc[...])).astype(out_ref.dtype)

    return kernel


# ---------------------------------------------------------------------------
# pallas_call wrapper
# ---------------------------------------------------------------------------
def _pool_masked_avg(attention_mask, hiddens):
    """Masked average of one or two hidden-state streams -> [B, H]."""
    n = len(hiddens)
    dtype = hiddens[-1].dtype
    B, S, H = hiddens[-1].shape
    itemsize = dtype.itemsize

    budget, _cap = _vmem_plan(n)

    # Batch tile: 8 (padding B up only when unavoidable), or full B when B<=8.
    if B <= 8:
        pad_b, t_b = B, B
    elif B % 8 == 0:
        pad_b, t_b = B, 8
    else:
        pad_b, t_b = -(-B // 8) * 8, 8

    want_split = (pad_b // t_b) < 2          # keep both v7x TensorCores busy
    t_h = _pick_hidden_tile(H, itemsize, t_b, budget, want_split)
    pad_s, t_s = _pick_seq_tile(S, itemsize, t_b, t_h, budget)

    mask = attention_mask.astype(jnp.float32)
    if pad_b != B or pad_s != S:
        # Zero-padded positions/rows contribute nothing to the sums; padded
        # batch rows (0/0 -> NaN, like the reference for empty masks) are
        # sliced off below.
        mask = jnp.pad(mask, ((0, pad_b - B), (0, pad_s - S)))
        hiddens = [jnp.pad(h, ((0, pad_b - B), (0, pad_s - S), (0, 0)))
                   for h in hiddens]

    grid = (pad_b // t_b, H // t_h, pad_s // t_s)

    # TODO(synk): sweep pipeline_mode=pl.Buffered(3) on hid_spec on real
    # hardware traces if step-boundary DMA shows up exposed.
    hid_spec = pl.BlockSpec((t_b, t_s, t_h), lambda b, h, s: (b, s, h))
    in_specs = ([pl.BlockSpec((t_b, t_s), lambda b, h, s: (b, s))]
                + [hid_spec] * n)
    out_spec = pl.BlockSpec((t_b, t_h), lambda b, h, s: (b, h))

    # Actual double-buffered working set -> explicit scoped-VMEM limit
    # (v5e's default is only 16 MiB; v7x has 64 MiB physical).
    need = (2 * n * t_b * t_s * t_h * itemsize     # hidden-state tiles
            + 2 * t_b * t_s * 4                    # mask tiles
            + 2 * t_b * t_h * itemsize             # output tiles
            + t_b * t_h * 4 + 8 * 128 * 4)         # f32 scratch accumulators
    vmem_limit = int(min(100 << 20, max(32 << 20, need * 5 // 4 + (2 << 20))))

    n_h_tiles = H // t_h
    cost = pl.CostEstimate(
        flops=int(2 * n * pad_b * pad_s * H),
        transcendentals=0,
        bytes_accessed=int(n * pad_b * pad_s * H * itemsize
                           + pad_b * pad_s * 4 * n_h_tiles
                           + pad_b * H * itemsize))

    out = pl.pallas_call(
        _make_masked_avg_kernel(n),
        out_shape=jax.ShapeDtypeStruct((pad_b, H), dtype),
        grid=grid,
        in_specs=in_specs,
        out_specs=out_spec,
        scratch_shapes=[
            pltpu.VMEM((t_b, t_h), jnp.float32),   # running masked sum
            pltpu.VMEM((t_b, 1), jnp.float32),     # running mask count
        ],
        compiler_params=pltpu.CompilerParams(
            dimension_semantics=("parallel", "parallel", "arbitrary"),
            vmem_limit_bytes=vmem_limit),
        cost_estimate=cost,
    )(mask, *hiddens)
    return out[:B] if pad_b != B else out


def pooler(pooler_type, attention_mask, hidden_states):
    """JAX/Pallas equivalent of Pooler.forward.

    attention_mask: [B, S] (float or int; 1 = keep, 0 = pad)
    hidden_states:  tuple/list of per-layer arrays, each [B, S, H]
                    (hidden_states[0] = embeddings, hidden_states[-1] = last).
    """
    assert pooler_type in ('cls', 'avg', 'avg_top2', 'avg_first_last'), \
        'unrecognized pooling type %s' % pooler_type
    last_hidden = hidden_states[-1]
    if pooler_type == 'cls':
        # Plain XLA slice per the perf review: reads only B*H elements; a
        # Pallas kernel would over-read 8 sequence rows ((8,128) sublane rule)
        # and pay a launch for a trivial gather.
        return last_hidden[:, 0]
    if pooler_type == 'avg':
        return _pool_masked_avg(attention_mask, [last_hidden])
    if pooler_type == 'avg_first_last':
        return _pool_masked_avg(attention_mask, [hidden_states[0], last_hidden])
    # 'avg_top2'
    return _pool_masked_avg(attention_mask, [hidden_states[-2], last_hidden])


# ---------------------------------------------------------------------------
# Pure-JAX reference (mirrors the PyTorch forward exactly)
# ---------------------------------------------------------------------------
def pooler_ref(pooler_type, attention_mask, hidden_states):
    last_hidden = hidden_states[-1]
    m = attention_mask.astype(jnp.float32)
    if pooler_type == 'cls':
        return last_hidden[:, 0]
    elif pooler_type == 'avg':
        return (last_hidden * m[:, :, None]).sum(1) / m.sum(-1)[:, None]
    elif pooler_type == 'avg_first_last':
        h = (hidden_states[0] + last_hidden) / 2.0
        return (h * m[:, :, None]).sum(1) / m.sum(-1)[:, None]
    elif pooler_type == 'avg_top2':
        h = (hidden_states[-2] + last_hidden) / 2.0
        return (h * m[:, :, None]).sum(1) / m.sum(-1)[:, None]


# ---------------------------------------------------------------------------
# Demo / self-test
# ---------------------------------------------------------------------------
def _make_case(key, B, S, H, L):
    keys = jax.random.split(key, L)
    hidden_states = tuple(
        jax.random.normal(keys[l], (B, S, H), dtype=jnp.float32)
        for l in range(L))
    # Deterministic mask: row b keeps the first max(1, S - b) tokens.
    lengths = jnp.maximum(1, S - jnp.arange(B))
    attention_mask = (jnp.arange(S)[None, :] < lengths[:, None]).astype(jnp.float32)
    return attention_mask, hidden_states


def _check_case(attention_mask, hidden_states):
    B, _, H = hidden_states[0].shape
    for ptype in ('cls', 'avg', 'avg_top2', 'avg_first_last'):
        out = jax.block_until_ready(pooler(ptype, attention_mask, hidden_states))
        ref = pooler_ref(ptype, attention_mask, hidden_states)
        assert out.shape == (B, H), (ptype, out.shape)
        # Tolerance covers the MXU's f32 matmul pass decomposition.
        assert jnp.allclose(out, ref, atol=1e-2, rtol=1e-2), \
            f"MISMATCH for pooler_type={ptype}"


if __name__ == "__main__":
    key = jax.random.PRNGKey(0)
    k1, k2, k3 = jax.random.split(key, 3)

    # 1) Small shapes consistent with the module (single grid step).
    _check_case(*_make_case(k1, B=2, S=8, H=32, L=3))

    # 2) Tiled path: sequence-axis accumulation + hidden-dim split for the
    #    two-TensorCore 'parallel' axis (grid (1, 2, 2) with a 6 MiB budget).
    _check_case(*_make_case(k2, B=8, S=1024, H=512, L=3))

    # 3) Padding fallbacks: B not a multiple of 8, S not a multiple of 128,
    #    with a full-S block that would exceed the tile budget.
    _check_case(*_make_case(k3, B=10, S=700, H=512, L=3))

    print("KERNEL_OK")
</pallas_src>

<mosaic_0001>
module attributes {stable_mosaic.version = 11 : i64} {
  func.func @kernel(%arg0: i32, %arg1: i32, %arg2: i32, %arg3: memref<2x8xf32, #tpu.memory_space<vmem>>, %arg4: memref<2x8x32xf32, #tpu.memory_space<vmem>>, %arg5: memref<2x32xf32, #tpu.memory_space<vmem>>, %arg6: memref<2x32xf32, #tpu.memory_space<vmem>>, %arg7: memref<2x1xf32, #tpu.memory_space<vmem>>) attributes {dimension_semantics = [#tpu.dimension_semantics<parallel>, #tpu.dimension_semantics<parallel>, #tpu.dimension_semantics<arbitrary>], iteration_bounds = array<i64: 1, 1, 1>, scalar_prefetch = 0 : i64, scratch_operands = 2 : i64, tpu.core_type = #tpu.core_type<tc>, window_params = [{transform_indices = @transform_0, window_bounds = array<i64: 2, 8>}, {transform_indices = @transform_1, window_bounds = array<i64: 2, 8, 32>}, {transform_indices = @transform_2, window_bounds = array<i64: 2, 32>}]} {
    %c0_i32 = arith.constant 0 : i32
    %0 = arith.cmpi eq, %arg2, %c0_i32 : i32
    %1 = arith.extui %0 : i1 to i32
    %c0_i32_0 = arith.constant 0 : i32
    %2 = arith.cmpi ne, %1, %c0_i32_0 : i32
    scf.if %2 {
      %cst_23 = arith.constant 0.000000e+00 : f32
      %26 = vector.broadcast %cst_23 : f32 to vector<2x32xf32>
      %c0_24 = arith.constant 0 : index
      %c0_25 = arith.constant 0 : index
      %27 = vector.load %arg6[%c0_24, %c0_25] : memref<2x32xf32, #tpu.memory_space<vmem>>, vector<2x32xf32>
      tpu.vector_store %arg6[%c0_24, %c0_25], %26 {strides = array<i32>} : memref<2x32xf32, #tpu.memory_space<vmem>>, vector<2x32xf32>,
      %cst_26 = arith.constant 0.000000e+00 : f32
      %28 = vector.broadcast %cst_26 : f32 to vector<2x1xf32>
      %c0_27 = arith.constant 0 : index
      %c0_28 = arith.constant 0 : index
      %29 = vector.load %arg7[%c0_27, %c0_28] : memref<2x1xf32, #tpu.memory_space<vmem>>, vector<2x1xf32>
      tpu.vector_store %arg7[%c0_27, %c0_28], %28 {strides = array<i32>} : memref<2x1xf32, #tpu.memory_space<vmem>>, vector<2x1xf32>,
    } else {
    }
    %c0 = arith.constant 0 : index
    %c0_1 = arith.constant 0 : index
    %3 = vector.load %arg3[%c0, %c0_1] : memref<2x8xf32, #tpu.memory_space<vmem>>, vector<2x8xf32>
    %c0_2 = arith.constant 0 : index
    %c0_3 = arith.constant 0 : index
    %4 = vector.load %arg7[%c0_2, %c0_3] : memref<2x1xf32, #tpu.memory_space<vmem>>, vector<2x1xf32>
    %cst = arith.constant dense<0.000000e+00> : vector<2xf32>
    %5 = vector.multi_reduction <add>, %3, %cst [1] : vector<2x8xf32> to vector<2xf32>
    %6 = vector.shape_cast %5 : vector<2xf32> to vector<2x1xf32>
    %7 = arith.addf %4, %6 : vector<2x1xf32>
    %c0_4 = arith.constant 0 : index
    %c0_5 = arith.constant 0 : index
    %8 = vector.load %arg7[%c0_4, %c0_5] : memref<2x1xf32, #tpu.memory_space<vmem>>, vector<2x1xf32>
    tpu.vector_store %arg7[%c0_4, %c0_5], %7 {strides = array<i32>} : memref<2x1xf32, #tpu.memory_space<vmem>>, vector<2x1xf32>,
    %9 = vector.extract_strided_slice %3 {offsets = [0, 0], sizes = [1, 8], strides = [1, 1]} : vector<2x8xf32> to vector<1x8xf32>
    %c0_6 = arith.constant 0 : index
    %c0_7 = arith.constant 0 : index
    %c0_8 = arith.constant 0 : index
    %10 = vector.load %arg4[%c0_6, %c0_7, %c0_8] : memref<2x8x32xf32, #tpu.memory_space<vmem>>, vector<1x8x32xf32>
    %11 = vector.shape_cast %10 : vector<1x8x32xf32> to vector<8x32xf32>
    %cst_9 = arith.constant dense<0.000000e+00> : vector<1x32xf32>
    %12 = tpu.matmul %9, %11, %cst_9 {dimension_numbers = #tpu.dot_dimension_numbers<[1], [0], [0], [1], [0, 0, 1, 1], [], []>} : vector<1x8xf32>, vector<8x32xf32>, vector<1x32xf32> -> vector<1x32xf32>
    %c0_10 = arith.constant 0 : index
    %c0_11 = arith.constant 0 : index
    %13 = vector.load %arg6[%c0_10, %c0_11] : memref<2x32xf32, #tpu.memory_space<vmem>>, vector<1x32xf32>
    %14 = arith.addf %13, %12 : vector<1x32xf32>
    %c0_12 = arith.constant 0 : index
    %c0_13 = arith.constant 0 : index
    %15 = vector.load %arg6[%c0_12, %c0_13] : memref<2x32xf32, #tpu.memory_space<vmem>>, vector<1x32xf32>
    tpu.vector_store %arg6[%c0_12, %c0_13], %14 {strides = array<i32>} : memref<2x32xf32, #tpu.memory_space<vmem>>, vector<1x32xf32>,
    %16 = vector.extract_strided_slice %3 {offsets = [1, 0], sizes = [1, 8], strides = [1, 1]} : vector<2x8xf32> to vector<1x8xf32>
    %c1 = arith.constant 1 : index
    %c0_14 = arith.constant 0 : index
    %c0_15 = arith.constant 0 : index
    %17 = vector.load %arg4[%c1, %c0_14, %c0_15] : memref<2x8x32xf32, #tpu.memory_space<vmem>>, vector<1x8x32xf32>
    %18 = vector.shape_cast %17 : vector<1x8x32xf32> to vector<8x32xf32>
    %cst_16 = arith.constant dense<0.000000e+00> : vector<1x32xf32>
    %19 = tpu.matmul %16, %18, %cst_16 {dimension_numbers = #tpu.dot_dimension_numbers<[1], [0], [0], [1], [0, 0, 1, 1], [], []>} : vector<1x8xf32>, vector<8x32xf32>, vector<1x32xf32> -> vector<1x32xf32>
    %c1_17 = arith.constant 1 : index
    %c0_18 = arith.constant 0 : index
    %20 = vector.load %arg6[%c1_17, %c0_18] : memref<2x32xf32, #tpu.memory_space<vmem>>, vector<1x32xf32>
    %21 = arith.addf %20, %19 : vector<1x32xf32>
    %c1_19 = arith.constant 1 : index
    %c0_20 = arith.constant 0 : index
    %22 = vector.load %arg6[%c1_19, %c0_20] : memref<2x32xf32, #tpu.memory_space<vmem>>, vector<1x32xf32>
    tpu.vector_store %arg6[%c1_19, %c0_20], %21 {strides = array<i32>} : memref<2x32xf32, #tpu.memory_space<vmem>>, vector<1x32xf32>,
    %c0_i32_21 = arith.constant 0 : i32
    %23 = arith.cmpi eq, %arg2, %c0_i32_21 : i32
    %24 = arith.extui %23 : i1 to i32
    %c0_i32_22 = arith.constant 0 : i32
    %25 = arith.cmpi ne, %24, %c0_i32_22 : i32
    scf.if %25 {
      %c0_23 = arith.constant 0 : index
      %c0_24 = arith.constant 0 : index
      %26 = vector.load %arg6[%c0_23, %c0_24] : memref<2x32xf32, #tpu.memory_space<vmem>>, vector<2x32xf32>
      %c0_25 = arith.constant 0 : index
      %c0_26 = arith.constant 0 : index
      %27 = vector.load %arg7[%c0_25, %c0_26] : memref<2x1xf32, #tpu.memory_space<vmem>>, vector<2x1xf32>
      %cst_27 = arith.constant 1.000000e+00 : f32
      %28 = vector.broadcast %cst_27 : f32 to vector<2x1xf32>
      %29 = arith.mulf %28, %27 : vector<2x1xf32>
      %30 = vector.broadcast %29 : vector<2x1xf32> to vector<2x32xf32>
      %31 = arith.divf %26, %30 : vector<2x32xf32>
      %c0_28 = arith.constant 0 : index
      %c0_29 = arith.constant 0 : index
      %32 = vector.load %arg5[%c0_28, %c0_29] : memref<2x32xf32, #tpu.memory_space<vmem>>, vector<2x32xf32>
      tpu.vector_store %arg5[%c0_28, %c0_29], %31 {strides = array<i32>} : memref<2x32xf32, #tpu.memory_space<vmem>>, vector<2x32xf32>,
    } else {
    }
    return
  }
  func.func @transform_0(%arg0: i32, %arg1: i32, %arg2: i32) -> (i32, i32) {
    %c0_i32 = arith.constant 0 : i32
    return %arg0, %arg2 : i32, i32
  }
  func.func @transform_1(%arg0: i32, %arg1: i32, %arg2: i32) -> (i32, i32, i32) {
    %c0_i32 = arith.constant 0 : i32
    return %arg0, %arg2, %arg1 : i32, i32, i32
  }
  func.func @transform_2(%arg0: i32, %arg1: i32, %arg2: i32) -> (i32, i32) {
    %c0_i32 = arith.constant 0 : i32
    return %arg0, %arg1 : i32, i32
  }
}

</mosaic_0001>

<llo_original>
// kernel: tpu_custom_call.1
$region0: #{tpu_custom_call.1}
  #allocation0 [shape = 'u32[]', space=smem, size = 0x4, offset = 0x4, fixed_abs, tag = 'smem constant byte address 0x4 - core index']
  #allocation1 [shape = 'u32[144,128]{1,0:T(1,128)}', space=vmem, size = 0x12000, scoped, tag = 'internal scratch']
  #allocation2 [shape = 'f32[2,32]{1,0:T(2,128)}', space=vmem, size = 0x400, scoped, tag = 'scratch operand']
  #allocation3 [shape = 'f32[2,1]{1,0:T(2,128)}', space=vmem, size = 0x400, scoped, tag = 'scratch operand']
  %s0 = inlined_call_operand.hbm [shape: f32[2,8], index: 0, kind: input, shape index: {}]
  %s1 = inlined_call_operand.hbm [shape: f32[2,8,32], index: 1, kind: input, shape index: {}]
  %s2 = inlined_call_operand.hbm [shape: f32[2,32], index: 2, kind: output, shape index: {}]
  %s3 = sld [smem:[#allocation0]]
  $region34: #{tpu_custom_call.1} parent=0
    _
  %s5 = ssub.s32 1, %s3
  %s6 = scalar_select 0, %s5, %s3
  $region1: #{tpu_custom_call.1} parent=0
    #allocation4 [shape = 'u8[1024]{0}', space=vmem, size = 0x400, scoped, tag = 'input window, operand 0, single buffered']
    #allocation5 [shape = 's32[1]{0}', space=sflag, size = 0x4, scoped, tag = 'scoped memory for tpu_custom_call.1']
    #allocation6 [shape = 's32[1]{0}', space=sflag, size = 0x4, scoped, tag = 'scoped memory for tpu_custom_call.1']
    #allocation7 [shape = 'u8[8192]{0}', space=vmem, size = 0x2000, scoped, tag = 'input window, operand 1, single buffered']
    #allocation8 [shape = 's32[1]{0}', space=sflag, size = 0x4, scoped, tag = 'scoped memory for tpu_custom_call.1']
    #allocation9 [shape = 'u8[1024]{0}', space=vmem, size = 0x400, scoped, tag = 'output window, operand 0, single buffered']
    %7 = vsyncpa [#allocation5], 0
    %8 = vsyncpa [#allocation8], 0
    %9 = vsyncpa [#allocation6], 0
    // Predicated region
    $region2: #{tpu_custom_call.1} parent=1 // pred_check
      _
    $region3: #{tpu_custom_call.1} parent=1 // pred_check_branch
      %11 = sbr.rel (0) target = $region5
    $region4: #{tpu_custom_call.1} parent=1 // pred_region
      %s13 = ssub.s32 32, 32
      %14 = vsyncadd [#allocation5], %s13
      %s16 = sshll.u32 [#allocation4], 4
      %s17 = int_to_ptr.vmem [resolvable:$true] %s16
      %19 = dma.hbm_to_vmem [thread:$0]  %s0, 32, %s17, [#allocation5]
    $region5: #{tpu_custom_call.1} parent=1 // pred_fallthru
      _
    // Predicated region
    $region6: #{tpu_custom_call.1} parent=1 // pred_check
      _
    $region7: #{tpu_custom_call.1} parent=1 // pred_check_branch
      %21 = sbr.rel (0) target = $region9
    $region8: #{tpu_custom_call.1} parent=1 // pred_region
      %s23 = ssub.s32 256, 256
      %24 = vsyncadd [#allocation8], %s23
      %s25 = sshll.u32 [#allocation7], 4
      %s26 = int_to_ptr.vmem [resolvable:$true] %s25
      %31 = dma.hbm_to_vmem [thread:$0]  %s1, 256, %s26, [#allocation8], 128, 128, 8
    $region9: #{tpu_custom_call.1} parent=1 // pred_fallthru
      _
    // Predicated region
    $region10: #{tpu_custom_call.1} parent=1 // pred_check
      _
    $region11: #{tpu_custom_call.1} parent=1 // pred_check_branch
      %33 = sbr.rel (0) target = $region13
    $region12: #{tpu_custom_call.1} parent=1 // pred_region
      %34 = dma.done [#allocation5], 32
    $region13: #{tpu_custom_call.1} parent=1 // pred_fallthru
      _
    // Predicated region
    $region14: #{tpu_custom_call.1} parent=1 // pred_check
      _
    $region15: #{tpu_custom_call.1} parent=1 // pred_check_branch
      %36 = sbr.rel (0) target = $region17
    $region16: #{tpu_custom_call.1} parent=1 // pred_region
      %37 = dma.done [#allocation8], 256
    $region17: #{tpu_custom_call.1} parent=1 // pred_fallthru
      _
    %p38 = scmp.eq.s32.totalorder 0, 0
    // Predicated region
    $region18: #{tpu_custom_call.1} parent=1 // pred_check
      %p39 = pneg %p38
    $region19: #{tpu_custom_call.1} parent=1 // pred_check_branch
      %41 = sbr.rel (%p39) target = $region21
    $region20: #{tpu_custom_call.1} parent=1 // pred_region
      %vm42 = vcmask 254976
      %43 = vst.msk [vmem:[#allocation2] sm:$0x3] %vm42, 0.0
      %vm44 = vcmask 1024
      %45 = vst.msk [vmem:[#allocation3] sm:$0x3] %vm44, 0.0
    $region21: #{tpu_custom_call.1} parent=1 // pred_fallthru
      _
    %v46 = vld [vmem:[#allocation4] sm:$0x3]
    %v47 = vld [vmem:[#allocation3] sm:$0x3]
    %vm48 = vcmask 58368
    %v49 = vsel %vm48, %v46, 0.0
    %50 = vadd.xlane.f32.xlu0 %v49
    %v51 = vpop.xlane.xlu0 %50
    %v52 = vadd.f32 %v47, %v51
    %vm53 = vcmask 1024
    %54 = vst.msk [vmem:[#allocation3] sm:$0x3] %vm53, %v52
    %v55 = vld [vmem:[#allocation7] sm:$0xff]
    %vm56 = vcmask 64512
    %v58 = vsel %vm56, %v46, 0
    %60 = vmatprep.subr.mxu0 0.0
    %61 = vmatpush1.msra.mxu0 %v55
    %62 = vmatprep.subr.mxu0 0.0
    %63 = vmatpush1.msra.mxu0 0.0
    %64 = vmatprep.subr.mxu0 0.0
    %65 = vmatpush1.msra.mxu0 0.0
    %66 = vmatprep.subr.mxu0 0.0
    %67 = vmatpush1.msra.mxu0 0.0
    %68 = vmatprep.subr.mxu0 0.0
    %69 = vmatpush1.msra.mxu0 0.0
    %70 = vmatprep.subr.mxu0 0.0
    %71 = vmatpush1.msra.mxu0 0.0
    %72 = vmatprep.subr.mxu0 0.0
    %73 = vmatpush1.msra.mxu0 0.0
    %74 = vmatprep.subr.mxu0 0.0
    %75 = vmatpush1.msra.mxu0 0.0
    %76 = vmatprep.subr.mxu0 0.0
    %77 = vmatpush1.msra.mxu0 0.0
    %78 = vmatprep.subr.mxu0 0.0
    %79 = vmatpush1.msra.mxu0 0.0
    %80 = vmatprep.subr.mxu0 0.0
    %81 = vmatpush1.msra.mxu0 0.0
    %82 = vmatprep.subr.mxu0 0.0
    %83 = vmatpush1.msra.mxu0 0.0
    %84 = vmatprep.subr.mxu0 0.0
    %85 = vmatpush1.msra.mxu0 0.0
    %86 = vmatprep.subr.mxu0 0.0
    %87 = vmatpush1.msra.mxu0 0.0
    %88 = vmatprep.subr.mxu0 0.0
    %89 = vmatpush1.msra.mxu0 0.0
    %90 = vmatprep.subr.mxu0 0.0
    %91 = vmatpush1.msra.mxu0 0.0
    %92 = vmatprep.subr.mxu0 0.0
    %93 = vmatpush1.msra.mxu0 0.0
    %94 = vmatprep.subr.mxu0 0.0
    %95 = vmatpush1.msra.mxu0 0.0
    %96 = vmatprep.subr.mxu0 0.0
    %97 = vmatpush1.msra.mxu0 0.0
    %98 = vmatprep.subr.mxu0 0.0
    %99 = vmatpush1.msra.mxu0 0.0
    %100 = vmatprep.subr.mxu0 0.0
    %101 = vmatpush1.msra.mxu0 0.0
    %102 = vmatprep.subr.mxu0 0.0
    %103 = vmatpush1.msra.mxu0 0.0
    %104 = vmatprep.subr.mxu0 0.0
    %105 = vmatpush1.msra.mxu0 0.0
    %106 = vmatprep.subr.mxu0 0.0
    %107 = vmatpush1.msra.mxu0 0.0
    %108 = vmatprep.subr.mxu0 0.0
    %109 = vmatpush1.msra.mxu0 0.0
    %110 = vmatprep.subr.mxu0 0.0
    %111 = vmatpush1.msra.mxu0 0.0
    %112 = vmatprep.subr.mxu0 0.0
    %113 = vmatpush1.msra.mxu0 0.0
    %114 = vmatprep.subr.mxu0 0.0
    %115 = vmatpush1.msra.mxu0 0.0
    %116 = vmatprep.subr.mxu0 0.0
    %117 = vmatpush1.msra.mxu0 0.0
    %118 = vmatprep.subr.mxu0 0.0
    %119 = vmatpush1.msra.mxu0 0.0
    %120 = vmatprep.subr.mxu0 0.0
    %121 = vmatpush1.msra.mxu0 0.0
    %122 = vmatprep.subr.mxu0 0.0
    %123 = vmatpush1.msra.mxu0 0.0
    %124 = vmatprep.mubr.f32.mxu0 0.0
    %125 = vmatmul.mubr.f32.gmra.mrb[0].mxu0 %v58
    %v126 = vpop.f32.mrb[0].mxu0
    %v127 = vadd.f32 0.0, %v126
    %v128 = vpop.f32.mrb[0].mxu0
    %129 = vdwg.mxu0
    %v130 = vld [vmem:[#allocation2] sm:$0x1]
    %v131 = vadd.f32 %v130, %v127
    %vm132 = vcmask 253952
    %133 = vst.msk [vmem:[#allocation2] sm:$0x1] %vm132, %v131
    %s134 = scalar_lea.vmem [#allocation7], 8
    %v135 = vld [vmem:[%s134] sm:$0xff]
    %v136 = vrot.slane %v46, 1
    %v137 = vsel %vm56, %v136, 0
    %139 = vmatprep.subr.mxu0 0.0
    %140 = vmatpush1.msra.mxu0 %v135
    %141 = vmatprep.subr.mxu0 0.0
    %142 = vmatpush1.msra.mxu0 0.0
    %143 = vmatprep.subr.mxu0 0.0
    %144 = vmatpush1.msra.mxu0 0.0
    %145 = vmatprep.subr.mxu0 0.0
    %146 = vmatpush1.msra.mxu0 0.0
    %147 = vmatprep.subr.mxu0 0.0
    %148 = vmatpush1.msra.mxu0 0.0
    %149 = vmatprep.subr.mxu0 0.0
    %150 = vmatpush1.msra.mxu0 0.0
    %151 = vmatprep.subr.mxu0 0.0
    %152 = vmatpush1.msra.mxu0 0.0
    %153 = vmatprep.subr.mxu0 0.0
    %154 = vmatpush1.msra.mxu0 0.0
    %155 = vmatprep.subr.mxu0 0.0
    %156 = vmatpush1.msra.mxu0 0.0
    %157 = vmatprep.subr.mxu0 0.0
    %158 = vmatpush1.msra.mxu0 0.0
    %159 = vmatprep.subr.mxu0 0.0
    %160 = vmatpush1.msra.mxu0 0.0
    %161 = vmatprep.subr.mxu0 0.0
    %162 = vmatpush1.msra.mxu0 0.0
    %163 = vmatprep.subr.mxu0 0.0
    %164 = vmatpush1.msra.mxu0 0.0
    %165 = vmatprep.subr.mxu0 0.0
    %166 = vmatpush1.msra.mxu0 0.0
    %167 = vmatprep.subr.mxu0 0.0
    %168 = vmatpush1.msra.mxu0 0.0
    %169 = vmatprep.subr.mxu0 0.0
    %170 = vmatpush1.msra.mxu0 0.0
    %171 = vmatprep.subr.mxu0 0.0
    %172 = vmatpush1.msra.mxu0 0.0
    %173 = vmatprep.subr.mxu0 0.0
    %174 = vmatpush1.msra.mxu0 0.0
    %175 = vmatprep.subr.mxu0 0.0
    %176 = vmatpush1.msra.mxu0 0.0
    %177 = vmatprep.subr.mxu0 0.0
    %178 = vmatpush1.msra.mxu0 0.0
    %179 = vmatprep.subr.mxu0 0.0
    %180 = vmatpush1.msra.mxu0 0.0
    %181 = vmatprep.subr.mxu0 0.0
    %182 = vmatpush1.msra.mxu0 0.0
    %183 = vmatprep.subr.mxu0 0.0
    %184 = vmatpush1.msra.mxu0 0.0
    %185 = vmatprep.subr.mxu0 0.0
    %186 = vmatpush1.msra.mxu0 0.0
    %187 = vmatprep.subr.mxu0 0.0
    %188 = vmatpush1.msra.mxu0 0.0
    %189 = vmatprep.subr.mxu0 0.0
    %190 = vmatpush1.msra.mxu0 0.0
    %191 = vmatprep.subr.mxu0 0.0
    %192 = vmatpush1.msra.mxu0 0.0
    %193 = vmatprep.subr.mxu0 0.0
    %194 = vmatpush1.msra.mxu0 0.0
    %195 = vmatprep.subr.mxu0 0.0
    %196 = vmatpush1.msra.mxu0 0.0
    %197 = vmatprep.subr.mxu0 0.0
    %198 = vmatpush1.msra.mxu0 0.0
    %199 = vmatprep.subr.mxu0 0.0
    %200 = vmatpush1.msra.mxu0 0.0
    %201 = vmatprep.subr.mxu0 0.0
    %202 = vmatpush1.msra.mxu0 0.0
    %203 = vmatprep.mubr.f32.mxu0 0.0
    %204 = vmatmul.mubr.f32.gmra.mrb[0].mxu0 %v137
    %v205 = vpop.f32.mrb[0].mxu0
    %v206 = vadd.f32 0.0, %v205
    %v207 = vpop.f32.mrb[0].mxu0
    %208 = vdwg.mxu0
    %v209 = vld [vmem:[#allocation2 + $0x1] sm:$0x1]
    %v210 = vadd.f32 %v209, %v206
    %211 = vst.msk [vmem:[#allocation2 + $0x1] sm:$0x1] %vm132, %v210
    // Predicated region
    $region22: #{tpu_custom_call.1} parent=1 // pred_check
      %p212 = pneg %p38
    $region23: #{tpu_custom_call.1} parent=1 // pred_check_branch
      %214 = sbr.rel (%p212) target = $region25
    $region24: #{tpu_custom_call.1} parent=1 // pred_region
      %v215 = vld [vmem:[#allocation2] sm:$0x3]
      %v216 = vld [vmem:[#allocation3] sm:$0x3]
      %218 = vset.pattern.permute.xlu0 0
      %219 = vperm.xlu0 %218, %v216
      %v220 = vpop.permute.xlu0 %219
      %v222 = vrcp.pop %v220
      %v223 = vmul.f32 %v215, %v222
      %vm224 = vcmask 254976
      %225 = vst.msk [vmem:[#allocation9] sm:$0x3] %vm224, %v223
    $region25: #{tpu_custom_call.1} parent=1 // pred_fallthru
      _
    // Predicated region
    $region26: #{tpu_custom_call.1} parent=1 // pred_check
      _
    $region27: #{tpu_custom_call.1} parent=1 // pred_check_branch
      %227 = sbr.rel (0) target = $region29
    $region28: #{tpu_custom_call.1} parent=1 // pred_region
      %s229 = ssub.s32 32, 32
      %230 = vsyncadd [#allocation6], %s229
      %s232 = sshll.u32 [#allocation9], 4
      %s233 = int_to_ptr.vmem [resolvable:$true] %s232
      %235 = dma.vmem_to_hbm [thread:$0]  %s233, 32, %s2, [#allocation6]
    $region29: #{tpu_custom_call.1} parent=1 // pred_fallthru
      _
    // Predicated region
    $region30: #{tpu_custom_call.1} parent=1 // pred_check
      _
    $region31: #{tpu_custom_call.1} parent=1 // pred_check_branch
      %237 = sbr.rel (0) target = $region33
    $region32: #{tpu_custom_call.1} parent=1 // pred_region
      %238 = dma.done [#allocation6], 32
    $region33: #{tpu_custom_call.1} parent=1 // pred_fallthru
      _
    %239 = vsyncpa [#allocation5], 1
    %240 = vsyncpa [#allocation8], 1
    %241 = vsyncpa [#allocation6], 1

</llo_original>
